<compile_context>
chip_gen: v7x
topology: tpu7x:2x2x1
jax: 0.10.0
libtpu: 0.0.40
codegen_flags: <defaults>
</compile_context>

<pallas_src>
import functools

import jax
import jax.numpy as jnp
from jax.experimental import pallas as pl
from jax.experimental.pallas import tpu as pltpu

BN_EPS = 1e-5
LANE = 128
VMEM_LIMIT = 32 * 1024 * 1024  # safe on v5e/v6e/v7x


def _round_up(x, m):
    return (x + m - 1) // m * m


# ---------------------------------------------------------------------------
# Path A (small K): single fused two-phase kernel, phase 1 recomputes the matmul.
# ---------------------------------------------------------------------------
def _fused_two_phase_kernel(patches_ref, w_ref, gamma_ref, beta_ref, alpha_ref,
                            o_ref, sum_ref, sumsq_ref, scale_ref, shift_ref,
                            *, inv_count):
    # patches_ref: (tm, K) bf16      w_ref: (K, Cout_pad) bf16
    # gamma/beta/alpha: (1, Cout_pad) f32   o_ref: (tm, Cout_pad) f32
    # scratch: sum/sumsq/scale/shift (1, Cout_pad) f32, persistent across the grid.
    phase = pl.program_id(0)
    m_idx = pl.program_id(1)
    num_m = pl.num_programs(1)

    # bf16 x bf16 on the MXU, f32 accumulation.  Padded rows/cols are zero so they
    # contribute nothing to y or to the statistics.  (Needed in both phases.)
    y = jnp.dot(patches_ref[...], w_ref[...], preferred_element_type=jnp.float32)

    @pl.when(phase == 0)
    def _accumulate_stats():
        @pl.when(m_idx == 0)
        def _init():
            sum_ref[...] = jnp.zeros_like(sum_ref)
            sumsq_ref[...] = jnp.zeros_like(sumsq_ref)

        sum_ref[...] += jnp.sum(y, axis=0, keepdims=True)
        sumsq_ref[...] += jnp.sum(y * y, axis=0, keepdims=True)

        @pl.when(m_idx == num_m - 1)
        def _finalize():
            # Biased (training-mode) variance via E[y^2] - mean^2 over the REAL
            # element count (padded rows are zero and excluded from the count).
            # NOTE: single-pass sumsq can cancel for very large M / large channel
            # means; acceptable at these scales (partial sums are per-tile f32).
            mean = sum_ref[...] * inv_count
            var = jnp.maximum(sumsq_ref[...] * inv_count - mean * mean, 0.0)
            scale = gamma_ref[...] * jax.lax.rsqrt(var + BN_EPS)  # rsqrt -> EUP
            scale_ref[...] = scale
            shift_ref[...] = beta_ref[...] - mean * scale

    @pl.when(phase == 1)
    def _apply():
        # Folded BN: one FMA, then PReLU select.  Full 128-lane store.
        # (Pre-folding scale into bf16 weights skipped: VPU has slack here.)
        z = y * scale_ref[...] + shift_ref[...]
        o_ref[...] = jnp.where(z >= 0.0, z, alpha_ref[...] * z)


# ---------------------------------------------------------------------------
# Path B (large K): pass 1 = matmul + stats + bf16 spill of y; pass 2 = apply.
# ---------------------------------------------------------------------------
def _stats_spill_kernel(patches_ref, w_ref, gamma_ref, beta_ref,
                        y_ref, scale_ref, shift_ref,
                        sum_ref, sumsq_ref, *, inv_count):
    m_idx = pl.program_id(0)
    num_m = pl.num_programs(0)

    y = jnp.dot(patches_ref[...], w_ref[...], preferred_element_type=jnp.float32)
    y_ref[...] = y.astype(y_ref.dtype)  # bf16 spill (half the write traffic)

    @pl.when(m_idx == 0)
    def _init():
        sum_ref[...] = jnp.zeros_like(sum_ref)
        sumsq_ref[...] = jnp.zeros_like(sumsq_ref)

    sum_ref[...] += jnp.sum(y, axis=0, keepdims=True)
    sumsq_ref[...] += jnp.sum(y * y, axis=0, keepdims=True)

    @pl.when(m_idx == num_m - 1)
    def _finalize():
        mean = sum_ref[...] * inv_count
        var = jnp.maximum(sumsq_ref[...] * inv_count - mean * mean, 0.0)
        scale = gamma_ref[...] * jax.lax.rsqrt(var + BN_EPS)
        scale_ref[...] = scale
        shift_ref[...] = beta_ref[...] - mean * scale


def _apply_spill_kernel(y_ref, scale_ref, shift_ref, alpha_ref, o_ref):
    z = y_ref[...].astype(jnp.float32) * scale_ref[...] + shift_ref[...]
    o_ref[...] = jnp.where(z >= 0.0, z, alpha_ref[...] * z)


# ---------------------------------------------------------------------------
# Wrapper
# ---------------------------------------------------------------------------
def convolution_forward(x_nchw, weight, gamma, beta, alpha, stride, *, tm=1024):
    """x_nchw: (N, Cin, H, W); weight: (Cout, Cin, KH, KW); returns (N, Cout, OH, OW)."""
    N, C, H, W = x_nchw.shape
    Cout, Cin, KH, KW = weight.shape
    assert C == Cin
    OH = (H - KH) // stride + 1
    OW = (W - KW) // stride + 1
    M = N * OH * OW
    K = Cin * KH * KW

    Cout_pad = _round_up(Cout, LANE)   # lane-dense output stores (do NOT grow to 256)
    tm = max(16, min(tm, _round_up(M, 16)))
    M_pad = _round_up(M, tm)
    num_m = M_pad // tm

    # --- im2col glue (K ordered (Cin, KH, KW) to match weight.reshape(Cout,-1)).
    # Input cast to bf16 up-front so the wrapper materializations move half the bytes.
    # K is intentionally NOT padded to 128 (see header).
    xb = x_nchw.astype(jnp.bfloat16)
    cols = []
    for i in range(KH):
        for j in range(KW):
            cols.append(xb[:, :, i:i + stride * OH:stride, j:j + stride * OW:stride])
    p = jnp.stack(cols, axis=0).reshape(KH, KW, N, Cin, OH, OW)
    p = jnp.transpose(p, (2, 4, 5, 3, 0, 1)).reshape(M, K)
    p = jnp.pad(p, ((0, M_pad - M), (0, 0)))                       # (M_pad, K) bf16

    w2d = weight.reshape(Cout, K).T                                 # (K, Cout)
    w2d = jnp.pad(w2d, ((0, 0), (0, Cout_pad - Cout))).astype(jnp.bfloat16)

    gamma2 = jnp.pad(gamma.reshape(1, Cout).astype(jnp.float32),
                     ((0, 0), (0, Cout_pad - Cout)))
    beta2 = jnp.pad(beta.reshape(1, Cout).astype(jnp.float32),
                    ((0, 0), (0, Cout_pad - Cout)))
    alpha2 = jnp.broadcast_to(alpha.reshape(1, 1).astype(jnp.float32), (1, Cout_pad))

    inv_count = 1.0 / float(M)
    cparams = pltpu.CompilerParams(
        dimension_semantics=("arbitrary", "arbitrary"),
        vmem_limit_bytes=VMEM_LIMIT)

    # HBM-traffic crossover: recompute re-reads K bf16 bytes/row of patches, spill
    # writes+reads Cout_pad bf16 bytes/row of y.  (Review: switch when K >= 2*Cout_pad.)
    spill = K >= 2 * Cout_pad

    if not spill:
        kernel = functools.partial(_fused_two_phase_kernel, inv_count=inv_count)
        out2d = pl.pallas_call(
            kernel,
            out_shape=jax.ShapeDtypeStruct((M_pad, Cout_pad), jnp.float32),
            grid_spec=pltpu.PrefetchScalarGridSpec(
                num_scalar_prefetch=0,
                grid=(2, num_m),                                   # (phase, m_tile)
                in_specs=[
                    pl.BlockSpec((tm, K), lambda ph, m: (m, 0)),          # patches
                    pl.BlockSpec((K, Cout_pad), lambda ph, m: (0, 0)),    # weights
                    pl.BlockSpec((1, Cout_pad), lambda ph, m: (0, 0)),    # gamma
                    pl.BlockSpec((1, Cout_pad), lambda ph, m: (0, 0)),    # beta
                    pl.BlockSpec((1, Cout_pad), lambda ph, m: (0, 0)),    # alpha
                ],
                # Phase 0 pins block 0 (index never changes -> no write-back until
                # phase 1 writes it for real); phase 1 writes each tile once.
                out_specs=pl.BlockSpec((tm, Cout_pad), lambda ph, m: (m * ph, 0)),
                scratch_shapes=[pltpu.VMEM((1, Cout_pad), jnp.float32)] * 4,
            ),
            compiler_params=cparams,
            cost_estimate=pl.CostEstimate(
                flops=2 * 2 * M_pad * K * Cout_pad,
                transcendentals=0,
                bytes_accessed=2 * M_pad * K * 2 + K * Cout_pad * 2
                               + M_pad * Cout_pad * 4),
        )(p, w2d, gamma2, beta2, alpha2)
    else:
        kernel1 = functools.partial(_stats_spill_kernel, inv_count=inv_count)
        y_sp, scale2, shift2 = pl.pallas_call(
            kernel1,
            out_shape=(jax.ShapeDtypeStruct((M_pad, Cout_pad), jnp.bfloat16),
                       jax.ShapeDtypeStruct((1, Cout_pad), jnp.float32),
                       jax.ShapeDtypeStruct((1, Cout_pad), jnp.float32)),
            grid_spec=pltpu.PrefetchScalarGridSpec(
                num_scalar_prefetch=0,
                grid=(num_m,),
                in_specs=[
                    pl.BlockSpec((tm, K), lambda m: (m, 0)),
                    pl.BlockSpec((K, Cout_pad), lambda m: (0, 0)),
                    pl.BlockSpec((1, Cout_pad), lambda m: (0, 0)),
                    pl.BlockSpec((1, Cout_pad), lambda m: (0, 0)),
                ],
                out_specs=[
                    pl.BlockSpec((tm, Cout_pad), lambda m: (m, 0)),   # y spill
                    pl.BlockSpec((1, Cout_pad), lambda m: (0, 0)),    # scale
                    pl.BlockSpec((1, Cout_pad), lambda m: (0, 0)),    # shift
                ],
                scratch_shapes=[pltpu.VMEM((1, Cout_pad), jnp.float32)] * 2,
            ),
            compiler_params=pltpu.CompilerParams(
                dimension_semantics=("arbitrary",),
                vmem_limit_bytes=VMEM_LIMIT),
            cost_estimate=pl.CostEstimate(
                flops=2 * M_pad * K * Cout_pad,
                transcendentals=0,
                bytes_accessed=M_pad * K * 2 + K * Cout_pad * 2
                               + M_pad * Cout_pad * 2),
        )(p, w2d, gamma2, beta2)

        out2d = pl.pallas_call(
            _apply_spill_kernel,
            out_shape=jax.ShapeDtypeStruct((M_pad, Cout_pad), jnp.float32),
            grid_spec=pltpu.PrefetchScalarGridSpec(
                num_scalar_prefetch=0,
                grid=(num_m,),
                in_specs=[
                    pl.BlockSpec((tm, Cout_pad), lambda m: (m, 0)),
                    pl.BlockSpec((1, Cout_pad), lambda m: (0, 0)),
                    pl.BlockSpec((1, Cout_pad), lambda m: (0, 0)),
                    pl.BlockSpec((1, Cout_pad), lambda m: (0, 0)),
                ],
                out_specs=pl.BlockSpec((tm, Cout_pad), lambda m: (m, 0)),
            ),
            compiler_params=pltpu.CompilerParams(
                dimension_semantics=("parallel",),       # fully independent tiles
                vmem_limit_bytes=VMEM_LIMIT),
            cost_estimate=pl.CostEstimate(
                flops=4 * M_pad * Cout_pad,
                transcendentals=0,
                bytes_accessed=M_pad * Cout_pad * (2 + 4)),
        )(y_sp, scale2, shift2, alpha2)

    # Strip padding; back to NCHW (module contract).  Output stays f32 to match the
    # PyTorch module; downstream fusion to bf16/NHWC is left to the caller.
    return out2d[:M, :Cout].reshape(N, OH, OW, Cout).transpose(0, 3, 1, 2)


def reference_forward(x, weight, gamma, beta, alpha, stride):
    """Pure-JAX f32 reference reproducing the PyTorch module (train-mode BN)."""
    y = jax.lax.conv_general_dilated(
        x, weight, window_strides=(stride, stride), padding="VALID",
        dimension_numbers=("NCHW", "OIHW", "NCHW"))
    mean = jnp.mean(y, axis=(0, 2, 3), keepdims=True)
    var = jnp.mean((y - mean) ** 2, axis=(0, 2, 3), keepdims=True)
    y_hat = (y - mean) * jax.lax.rsqrt(var + BN_EPS)
    z = y_hat * gamma.reshape(1, -1, 1, 1) + beta.reshape(1, -1, 1, 1)
    return jnp.where(z >= 0, z, alpha.reshape(1, 1, 1, 1) * z)


def _run_case(key, N, Cin, H, W, Cout, KH, stride, tm):
    kx, kw, kg, kb = jax.random.split(key, 4)
    x = jax.random.normal(kx, (N, Cin, H, W), dtype=jnp.float32)
    weight = 0.1 * jax.random.normal(kw, (Cout, Cin, KH, KH), dtype=jnp.float32)
    gamma = 1.0 + 0.1 * jax.random.normal(kg, (Cout,), dtype=jnp.float32)
    beta = 0.1 * jax.random.normal(kb, (Cout,), dtype=jnp.float32)
    alpha = jnp.full((1,), 0.25, dtype=jnp.float32)   # PReLU default

    out = convolution_forward(x, weight, gamma, beta, alpha, stride, tm=tm)
    out = jax.block_until_ready(out)
    ref = reference_forward(x, weight, gamma, beta, alpha, stride)
    OH = (H - KH) // stride + 1
    assert out.shape == (N, Cout, OH, OH)
    # Tolerance reflects bf16 MXU operands (accumulation stays f32).
    assert jnp.allclose(out, ref, atol=5e-2, rtol=5e-2), "mismatch vs reference"


if __name__ == "__main__":
    key = jax.random.PRNGKey(0)
    k1, k2 = jax.random.split(key)

    # Case 1: Convolution(in_channels=4, out_channels=8, kernel_size=3, stride=2)
    # K = 36 < 2*Cout_pad -> fused two-phase recompute path; tm=64 forces 2 M-tiles
    # so the multi-tile global-BN-stats path (incl. zero-padded rows) is exercised.
    _run_case(k1, N=2, Cin=4, H=16, W=16, Cout=8, KH=3, stride=2, tm=64)

    # Case 2: deeper-layer style shapes (Cin=32, 3x3, stride 1): K = 288 >= 2*Cout_pad
    # -> spill-y path (matmul+stats pass, then element-wise apply pass).
    _run_case(k2, N=2, Cin=32, H=8, W=8, Cout=8, KH=3, stride=1, tm=32)

    print("KERNEL_OK")
</pallas_src>

<mosaic_0001>
module attributes {stable_mosaic.version = 11 : i64} {
  func.func @_fused_two_phase_kernel(%arg0: i32, %arg1: i32, %arg2: memref<64x36xbf16, #tpu.memory_space<vmem>>, %arg3: memref<36x128xbf16, #tpu.memory_space<vmem>>, %arg4: memref<1x128xf32, #tpu.memory_space<vmem>>, %arg5: memref<1x128xf32, #tpu.memory_space<vmem>>, %arg6: memref<1x128xf32, #tpu.memory_space<vmem>>, %arg7: memref<64x128xf32, #tpu.memory_space<vmem>>, %arg8: memref<1x128xf32, #tpu.memory_space<vmem>>, %arg9: memref<1x128xf32, #tpu.memory_space<vmem>>, %arg10: memref<1x128xf32, #tpu.memory_space<vmem>>, %arg11: memref<1x128xf32, #tpu.memory_space<vmem>>) attributes {dimension_semantics = [#tpu.dimension_semantics<arbitrary>, #tpu.dimension_semantics<arbitrary>], iteration_bounds = array<i64: 2, 2>, scalar_prefetch = 0 : i64, scratch_operands = 4 : i64, tpu.core_type = #tpu.core_type<tc>, window_params = [{transform_indices = @transform_0, window_bounds = array<i64: 64, 36>}, {pipeline_mode = #tpu.pipeline_mode<synchronous>, transform_indices = @transform_1, window_bounds = array<i64: 36, 128>}, {pipeline_mode = #tpu.pipeline_mode<synchronous>, transform_indices = @transform_2, window_bounds = array<i64: 1, 128>}, {pipeline_mode = #tpu.pipeline_mode<synchronous>, transform_indices = @transform_3, window_bounds = array<i64: 1, 128>}, {pipeline_mode = #tpu.pipeline_mode<synchronous>, transform_indices = @transform_4, window_bounds = array<i64: 1, 128>}, {transform_indices = @transform_5, window_bounds = array<i64: 64, 128>}]} {
    %c0 = arith.constant 0 : index
    %c0_0 = arith.constant 0 : index
    %0 = vector.load %arg2[%c0, %c0_0] : memref<64x36xbf16, #tpu.memory_space<vmem>>, vector<64x36xbf16>
    %c0_1 = arith.constant 0 : index
    %c0_2 = arith.constant 0 : index
    %1 = vector.load %arg3[%c0_1, %c0_2] : memref<36x128xbf16, #tpu.memory_space<vmem>>, vector<36x128xbf16>
    %cst = arith.constant dense<0.000000e+00> : vector<64x128xf32>
    %2 = tpu.matmul %0, %1, %cst {dimension_numbers = #tpu.dot_dimension_numbers<[1], [0], [0], [1], [0, 0, 1, 1], [], []>} : vector<64x36xbf16>, vector<36x128xbf16>, vector<64x128xf32> -> vector<64x128xf32>
    %c0_i32 = arith.constant 0 : i32
    %3 = arith.cmpi eq, %arg0, %c0_i32 : i32
    %4 = arith.extui %3 : i1 to i32
    %c0_i32_3 = arith.constant 0 : i32
    %5 = arith.cmpi ne, %4, %c0_i32_3 : i32
    scf.if %5 {
      %c0_i32_5 = arith.constant 0 : i32
      %9 = arith.cmpi eq, %arg1, %c0_i32_5 : i32
      %10 = arith.extui %9 : i1 to i32
      %c0_i32_6 = arith.constant 0 : i32
      %11 = arith.cmpi ne, %10, %c0_i32_6 : i32
      scf.if %11 {
        %cst_19 = arith.constant 0.000000e+00 : f32
        %26 = vector.broadcast %cst_19 : f32 to vector<1x128xf32>
        %c0_20 = arith.constant 0 : index
        %c0_21 = arith.constant 0 : index
        %27 = vector.load %arg8[%c0_20, %c0_21] : memref<1x128xf32, #tpu.memory_space<vmem>>, vector<1x128xf32>
        tpu.vector_store %arg8[%c0_20, %c0_21], %26 {strides = array<i32>} : memref<1x128xf32, #tpu.memory_space<vmem>>, vector<1x128xf32>,
        %cst_22 = arith.constant 0.000000e+00 : f32
        %28 = vector.broadcast %cst_22 : f32 to vector<1x128xf32>
        %c0_23 = arith.constant 0 : index
        %c0_24 = arith.constant 0 : index
        %29 = vector.load %arg9[%c0_23, %c0_24] : memref<1x128xf32, #tpu.memory_space<vmem>>, vector<1x128xf32>
        tpu.vector_store %arg9[%c0_23, %c0_24], %28 {strides = array<i32>} : memref<1x128xf32, #tpu.memory_space<vmem>>, vector<1x128xf32>,
      } else {
      }
      %c0_7 = arith.constant 0 : index
      %c0_8 = arith.constant 0 : index
      %12 = vector.load %arg8[%c0_7, %c0_8] : memref<1x128xf32, #tpu.memory_space<vmem>>, vector<1x128xf32>
      %cst_9 = arith.constant dense<0.000000e+00> : vector<128xf32>
      %13 = vector.multi_reduction <add>, %2, %cst_9 [0] : vector<64x128xf32> to vector<128xf32>
      %14 = vector.shape_cast %13 : vector<128xf32> to vector<1x128xf32>
      %15 = arith.addf %12, %14 : vector<1x128xf32>
      %c0_10 = arith.constant 0 : index
      %c0_11 = arith.constant 0 : index
      %16 = vector.load %arg8[%c0_10, %c0_11] : memref<1x128xf32, #tpu.memory_space<vmem>>, vector<1x128xf32>
      tpu.vector_store %arg8[%c0_10, %c0_11], %15 {strides = array<i32>} : memref<1x128xf32, #tpu.memory_space<vmem>>, vector<1x128xf32>,
      %c0_12 = arith.constant 0 : index
      %c0_13 = arith.constant 0 : index
      %17 = vector.load %arg9[%c0_12, %c0_13] : memref<1x128xf32, #tpu.memory_space<vmem>>, vector<1x128xf32>
      %18 = arith.mulf %2, %2 : vector<64x128xf32>
      %cst_14 = arith.constant dense<0.000000e+00> : vector<128xf32>
      %19 = vector.multi_reduction <add>, %18, %cst_14 [0] : vector<64x128xf32> to vector<128xf32>
      %20 = vector.shape_cast %19 : vector<128xf32> to vector<1x128xf32>
      %21 = arith.addf %17, %20 : vector<1x128xf32>
      %c0_15 = arith.constant 0 : index
      %c0_16 = arith.constant 0 : index
      %22 = vector.load %arg9[%c0_15, %c0_16] : memref<1x128xf32, #tpu.memory_space<vmem>>, vector<1x128xf32>
      tpu.vector_store %arg9[%c0_15, %c0_16], %21 {strides = array<i32>} : memref<1x128xf32, #tpu.memory_space<vmem>>, vector<1x128xf32>,
      %c1_i32_17 = arith.constant 1 : i32
      %23 = arith.cmpi eq, %arg1, %c1_i32_17 : i32
      %24 = arith.extui %23 : i1 to i32
      %c0_i32_18 = arith.constant 0 : i32
      %25 = arith.cmpi ne, %24, %c0_i32_18 : i32
      scf.if %25 {
        %c0_19 = arith.constant 0 : index
        %c0_20 = arith.constant 0 : index
        %26 = vector.load %arg8[%c0_19, %c0_20] : memref<1x128xf32, #tpu.memory_space<vmem>>, vector<1x128xf32>
        %cst_21 = arith.constant 0.0102040814 : f32
        %27 = vector.broadcast %cst_21 : f32 to vector<1x128xf32>
        %28 = arith.mulf %26, %27 : vector<1x128xf32>
        %c0_22 = arith.constant 0 : index
        %c0_23 = arith.constant 0 : index
        %29 = vector.load %arg9[%c0_22, %c0_23] : memref<1x128xf32, #tpu.memory_space<vmem>>, vector<1x128xf32>
        %cst_24 = arith.constant 0.0102040814 : f32
        %30 = vector.broadcast %cst_24 : f32 to vector<1x128xf32>
        %31 = arith.mulf %29, %30 : vector<1x128xf32>
        %32 = arith.mulf %28, %28 : vector<1x128xf32>
        %33 = arith.subf %31, %32 : vector<1x128xf32>
        %cst_25 = arith.constant 0.000000e+00 : f32
        %34 = vector.broadcast %cst_25 : f32 to vector<1x128xf32>
        %35 = arith.maximumf %33, %34 : vector<1x128xf32>
        %c0_26 = arith.constant 0 : index
        %c0_27 = arith.constant 0 : index
        %36 = vector.load %arg4[%c0_26, %c0_27] : memref<1x128xf32, #tpu.memory_space<vmem>>, vector<1x128xf32>
        %cst_28 = arith.constant 9.99999974E-6 : f32
        %37 = vector.broadcast %cst_28 : f32 to vector<1x128xf32>
        %38 = arith.addf %35, %37 : vector<1x128xf32>
        %39 = math.rsqrt %38 : vector<1x128xf32>
        %40 = arith.mulf %36, %39 : vector<1x128xf32>
        %c0_29 = arith.constant 0 : index
        %c0_30 = arith.constant 0 : index
        %41 = vector.load %arg10[%c0_29, %c0_30] : memref<1x128xf32, #tpu.memory_space<vmem>>, vector<1x128xf32>
        tpu.vector_store %arg10[%c0_29, %c0_30], %40 {strides = array<i32>} : memref<1x128xf32, #tpu.memory_space<vmem>>, vector<1x128xf32>,
        %c0_31 = arith.constant 0 : index
        %c0_32 = arith.constant 0 : index
        %42 = vector.load %arg5[%c0_31, %c0_32] : memref<1x128xf32, #tpu.memory_space<vmem>>, vector<1x128xf32>
        %43 = arith.mulf %28, %40 : vector<1x128xf32>
        %44 = arith.subf %42, %43 : vector<1x128xf32>
        %c0_33 = arith.constant 0 : index
        %c0_34 = arith.constant 0 : index
        %45 = vector.load %arg11[%c0_33, %c0_34] : memref<1x128xf32, #tpu.memory_space<vmem>>, vector<1x128xf32>
        tpu.vector_store %arg11[%c0_33, %c0_34], %44 {strides = array<i32>} : memref<1x128xf32, #tpu.memory_space<vmem>>, vector<1x128xf32>,
      } else {
      }
    } else {
    }
    %c1_i32 = arith.constant 1 : i32
    %6 = arith.cmpi eq, %arg0, %c1_i32 : i32
    %7 = arith.extui %6 : i1 to i32
    %c0_i32_4 = arith.constant 0 : i32
    %8 = arith.cmpi ne, %7, %c0_i32_4 : i32
    scf.if %8 {
      %c0_5 = arith.constant 0 : index
      %c0_6 = arith.constant 0 : index
      %9 = vector.load %arg10[%c0_5, %c0_6] : memref<1x128xf32, #tpu.memory_space<vmem>>, vector<1x128xf32>
      %10 = vector.broadcast %9 : vector<1x128xf32> to vector<64x128xf32>
      %11 = arith.mulf %2, %10 : vector<64x128xf32>
      %c0_7 = arith.constant 0 : index
      %c0_8 = arith.constant 0 : index
      %12 = vector.load %arg11[%c0_7, %c0_8] : memref<1x128xf32, #tpu.memory_space<vmem>>, vector<1x128xf32>
      %13 = vector.broadcast %12 : vector<1x128xf32> to vector<64x128xf32>
      %14 = arith.addf %11, %13 : vector<64x128xf32>
      %cst_9 = arith.constant 0.000000e+00 : f32
      %15 = vector.broadcast %cst_9 : f32 to vector<64x128xf32>
      %16 = arith.cmpf oge, %14, %15 : vector<64x128xf32>
      %c0_10 = arith.constant 0 : index
      %c0_11 = arith.constant 0 : index
      %17 = vector.load %arg6[%c0_10, %c0_11] : memref<1x128xf32, #tpu.memory_space<vmem>>, vector<1x128xf32>
      %18 = vector.broadcast %17 : vector<1x128xf32> to vector<64x128xf32>
      %19 = arith.mulf %18, %14 : vector<64x128xf32>
      %20 = arith.select %16, %14, %19 : vector<64x128xi1>, vector<64x128xf32>
      %c0_12 = arith.constant 0 : index
      %c0_13 = arith.constant 0 : index
      %21 = vector.load %arg7[%c0_12, %c0_13] : memref<64x128xf32, #tpu.memory_space<vmem>>, vector<64x128xf32>
      tpu.vector_store %arg7[%c0_12, %c0_13], %20 {strides = array<i32>} : memref<64x128xf32, #tpu.memory_space<vmem>>, vector<64x128xf32>,
    } else {
    }
    return
  }
  func.func @transform_0(%arg0: i32, %arg1: i32) -> (i32, i32) {
    %c0_i32 = arith.constant 0 : i32
    %c0_i32_0 = arith.constant 0 : i32
    return %arg1, %c0_i32 : i32, i32
  }
  func.func @transform_1(%arg0: i32, %arg1: i32) -> (i32, i32) {
    %c0_i32 = arith.constant 0 : i32
    %c0_i32_0 = arith.constant 0 : i32
    %c0_i32_1 = arith.constant 0 : i32
    return %c0_i32, %c0_i32_0 : i32, i32
  }
  func.func @transform_2(%arg0: i32, %arg1: i32) -> (i32, i32) {
    %c0_i32 = arith.constant 0 : i32
    %c0_i32_0 = arith.constant 0 : i32
    %c0_i32_1 = arith.constant 0 : i32
    return %c0_i32, %c0_i32_0 : i32, i32
  }
  func.func @transform_3(%arg0: i32, %arg1: i32) -> (i32, i32) {
    %c0_i32 = arith.constant 0 : i32
    %c0_i32_0 = arith.constant 0 : i32
    %c0_i32_1 = arith.constant 0 : i32
    return %c0_i32, %c0_i32_0 : i32, i32
  }
  func.func @transform_4(%arg0: i32, %arg1: i32) -> (i32, i32) {
    %c0_i32 = arith.constant 0 : i32
    %c0_i32_0 = arith.constant 0 : i32
    %c0_i32_1 = arith.constant 0 : i32
    return %c0_i32, %c0_i32_0 : i32, i32
  }
  func.func @transform_5(%arg0: i32, %arg1: i32) -> (i32, i32) {
    %0 = arith.muli %arg1, %arg0 : i32
    %c0_i32 = arith.constant 0 : i32
    %c0_i32_0 = arith.constant 0 : i32
    return %0, %c0_i32 : i32, i32
  }
}

</mosaic_0001>

<llo_original>
// kernel: tpu_custom_call.1
$region0: #{tpu_custom_call.1}
  #allocation0 [shape = 'u32[]', space=smem, size = 0x4, offset = 0x4, fixed_abs, tag = 'smem constant byte address 0x4 - core index']
  #allocation1 [shape = 'u32[144,128]{1,0:T(1,128)}', space=vmem, size = 0x12000, scoped, tag = 'internal scratch']
  #allocation2 [shape = 'f32[1,128]{1,0:T(1,128)}', space=vmem, size = 0x200, scoped, tag = 'scratch operand']
  #allocation3 [shape = 'f32[1,128]{1,0:T(1,128)}', space=vmem, size = 0x200, scoped, tag = 'scratch operand']
  #allocation4 [shape = 'f32[1,128]{1,0:T(1,128)}', space=vmem, size = 0x200, scoped, tag = 'scratch operand']
  #allocation5 [shape = 'f32[1,128]{1,0:T(1,128)}', space=vmem, size = 0x200, scoped, tag = 'scratch operand']
  %s0 = inlined_call_operand.vmem [shape: bf16[128,36], index: 0, kind: input, shape index: {}]
  %s1 = inlined_call_operand.vmem [shape: bf16[36,128], index: 1, kind: input, shape index: {}]
  %s2 = inlined_call_operand.vmem [shape: f32[1,128], index: 2, kind: input, shape index: {}]
  %s3 = inlined_call_operand.vmem [shape: f32[1,128], index: 3, kind: input, shape index: {}]
  %s4 = inlined_call_operand.vmem [shape: f32[1,128], index: 4, kind: input, shape index: {}]
  %s5 = inlined_call_operand.hbm [shape: f32[128,128], index: 5, kind: output, shape index: {}]
  %s6 = sld [smem:[#allocation0]]
  $region69: #{tpu_custom_call.1} parent=0
    _
  %s8 = ssub.s32 1, %s6
  %s9 = scalar_select 0, %s8, %s6
  $region1: #{tpu_custom_call.1} parent=0
    #allocation6 [shape = 'u8[65536]{0}', space=vmem, size = 0x10000, scoped, tag = 'output window, operand 0']
    #allocation7 [shape = 's32[2]{0}', space=sflag, size = 0x8, scoped, tag = 'scoped memory for tpu_custom_call.1']
    %10 = vsyncpa [#allocation7], 0
    %s11 = scalar_lea.sflag [#allocation7], 1
    %12 = vsyncpa %s11, 0
    loop: start=0, step=1, limit=6
    $region2: #{tpu_custom_call.1} parent=1 // loop_pre_header
      _
    $region3: #{tpu_custom_call.1} parent=1 // loop_header
      %s14 = sphi 0, %s18
      %p15 = scmp.ge.s32.totalorder %s14, 6
      %s21 = sphi 0, %s33
      %s22 = sphi 0, %s29
      %s23 = sphi 0, %s21
      %s24 = sphi 0, %s22
      %s25 = sphi 0, %s23
      %s26 = sphi 0, %s24
      %s36 = sphi 0, %s38
      %s39 = sphi 0, %s36
      %s40 = sphi 0, %s39
      %s56 = sphi 0, %s40
      %s60 = sphi 0, %s60
      %s62 = sphi 0, %s60
      %s63 = sphi 0, %s62
      %s77 = sphi 0, %s63
      %s81 = sphi 0, %s81
      %s83 = sphi 0, %s81
      %s84 = sphi 0, %s83
      %s98 = sphi 0, %s84
      %s102 = sphi 0, %s102
      %s104 = sphi 0, %s102
      %s105 = sphi 0, %s104
      %s119 = sphi 0, %s105
      %s123 = sphi 0, %s123
      %s125 = sphi 0, %s123
      %s126 = sphi 0, %s125
      %s140 = sphi 0, %s126
      %s148 = sphi 0, %s150
      %s151 = sphi 0, %s148
      %s152 = sphi 0, %s151
      %s168 = sphi 0, %s152
    $region4: #{tpu_custom_call.1} parent=1 // loop_header_branch
      %17 = sbr.rel (%p15) target = $region8
    $region5: #{tpu_custom_call.1} parent=1 // loop_body
      %s19 = ssub.s32 %s14, 1
      %s20 = ssub.s32 %s14, 2
      %s27 = sadd.s32 1, %s22
      %p28 = scmp.ge.s32.totalorder %s27, 2
      %s29 = scalar_select %p28, 0, %s27
      %s30 = sadd.s32 1, %s21
      %s31 = scalar_select %p28, %s30, %s21
      %p32 = scmp.ge.s32.totalorder %s31, 2
      %s33 = scalar_select %p32, 0, %s31
      %s34 = ssub.s32 %s22, %s29
      %p35 = scmp.eq.s32.totalorder %s34, 0
      %s37 = sadd.s32 %s36, 1
      %s38 = scalar_select %p35, %s36, %s37
      %p41 = pneg %p35
      %p42 = scmp.eq.s32.totalorder %s14, 3
      %p43 = por %p41, %p42
      %p44 = scmp.ne.s32.totalorder %s36, %s39
      %p45 = scmp.eq.s32.totalorder %s14, 0
      %p46 = por %p44, %p45
      %p47 = scmp.ne.s32.totalorder %s36, %s39
      %p48 = scmp.eq.s32.totalorder %s19, 3
      %p49 = por %p47, %p48
      %p50 = scmp.ne.s32.totalorder %s39, %s40
      %p51 = scmp.eq.s32.totalorder %s19, 0
      %p52 = por %p50, %p51
      %p53 = scmp.ne.s32.totalorder %s39, %s40
      %p54 = scmp.eq.s32.totalorder %s20, 3
      %p55 = por %p53, %p54
      %p57 = scmp.ne.s32.totalorder %s40, %s56
      %p58 = scmp.eq.s32.totalorder %s20, 0
      %p59 = por %p57, %p58
      %s61 = sadd.s32 %s60, 1
      %p64 = scmp.eq.s32.totalorder %s14, 3
      %p65 = scmp.ne.s32.totalorder %s60, %s62
      %p66 = scmp.eq.s32.totalorder %s14, 0
      %p67 = por %p65, %p66
      %p68 = scmp.ne.s32.totalorder %s60, %s62
      %p69 = scmp.eq.s32.totalorder %s19, 3
      %p70 = por %p68, %p69
      %p71 = scmp.ne.s32.totalorder %s62, %s63
      %p72 = scmp.eq.s32.totalorder %s19, 0
      %p73 = por %p71, %p72
      %p74 = scmp.ne.s32.totalorder %s62, %s63
      %p75 = scmp.eq.s32.totalorder %s20, 3
      %p76 = por %p74, %p75
      %p78 = scmp.ne.s32.totalorder %s63, %s77
      %p79 = scmp.eq.s32.totalorder %s20, 0
      %p80 = por %p78, %p79
      %s82 = sadd.s32 %s81, 1
      %p85 = scmp.eq.s32.totalorder %s14, 3
      %p86 = scmp.ne.s32.totalorder %s81, %s83
      %p87 = scmp.eq.s32.totalorder %s14, 0
      %p88 = por %p86, %p87
      %p89 = scmp.ne.s32.totalorder %s81, %s83
      %p90 = scmp.eq.s32.totalorder %s19, 3
      %p91 = por %p89, %p90
      %p92 = scmp.ne.s32.totalorder %s83, %s84
      %p93 = scmp.eq.s32.totalorder %s19, 0
      %p94 = por %p92, %p93
      %p95 = scmp.ne.s32.totalorder %s83, %s84
      %p96 = scmp.eq.s32.totalorder %s20, 3
      %p97 = por %p95, %p96
      %p99 = scmp.ne.s32.totalorder %s84, %s98
      %p100 = scmp.eq.s32.totalorder %s20, 0
      %p101 = por %p99, %p100
      %s103 = sadd.s32 %s102, 1
      %p106 = scmp.eq.s32.totalorder %s14, 3
      %p107 = scmp.ne.s32.totalorder %s102, %s104
      %p108 = scmp.eq.s32.totalorder %s14, 0
      %p109 = por %p107, %p108
      %p110 = scmp.ne.s32.totalorder %s102, %s104
      %p111 = scmp.eq.s32.totalorder %s19, 3
      %p112 = por %p110, %p111
      %p113 = scmp.ne.s32.totalorder %s104, %s105
      %p114 = scmp.eq.s32.totalorder %s19, 0
      %p115 = por %p113, %p114
      %p116 = scmp.ne.s32.totalorder %s104, %s105
      %p117 = scmp.eq.s32.totalorder %s20, 3
      %p118 = por %p116, %p117
      %p120 = scmp.ne.s32.totalorder %s105, %s119
      %p121 = scmp.eq.s32.totalorder %s20, 0
      %p122 = por %p120, %p121
      %s124 = sadd.s32 %s123, 1
      %p127 = scmp.eq.s32.totalorder %s14, 3
      %p128 = scmp.ne.s32.totalorder %s123, %s125
      %p129 = scmp.eq.s32.totalorder %s14, 0
      %p130 = por %p128, %p129
      %p131 = scmp.ne.s32.totalorder %s123, %s125
      %p132 = scmp.eq.s32.totalorder %s19, 3
      %p133 = por %p131, %p132
      %p134 = scmp.ne.s32.totalorder %s125, %s126
      %p135 = scmp.eq.s32.totalorder %s19, 0
      %p136 = por %p134, %p135
      %p137 = scmp.ne.s32.totalorder %s125, %s126
      %p138 = scmp.eq.s32.totalorder %s20, 3
      %p139 = por %p137, %p138
      %p141 = scmp.ne.s32.totalorder %s126, %s140
      %p142 = scmp.eq.s32.totalorder %s20, 0
      %p143 = por %p141, %p142
      %s144 = smul.u32 %s22, %s21
      %s145 = smul.u32 %s29, %s33
      %s146 = ssub.s32 %s144, %s145
      %p147 = scmp.eq.s32.totalorder %s146, 0
      %s149 = sadd.s32 %s148, 1
      %s150 = scalar_select %p147, %s148, %s149
      %p153 = pneg %p147
      %p154 = scmp.eq.s32.totalorder %s14, 3
      %p155 = por %p153, %p154
      %p156 = scmp.ne.s32.totalorder %s148, %s151
      %p157 = scmp.eq.s32.totalorder %s14, 0
      %p158 = por %p156, %p157
      %p159 = scmp.ne.s32.totalorder %s148, %s151
      %p160 = scmp.eq.s32.totalorder %s19, 3
      %p161 = por %p159, %p160
      %p162 = scmp.ne.s32.totalorder %s151, %s152
      %p163 = scmp.eq.s32.totalorder %s19, 0
      %p164 = por %p162, %p163
      %p165 = scmp.ne.s32.totalorder %s151, %s152
      %p166 = scmp.eq.s32.totalorder %s20, 3
      %p167 = por %p165, %p166
      %p169 = scmp.ne.s32.totalorder %s152, %s168
      %p170 = scmp.eq.s32.totalorder %s20, 0
      %p171 = por %p169, %p170
      %p172 = scmp.le.s32.totalorder 1, %s14
      %p173 = scmp.lt.s32.totalorder %s14, 5
      %p174 = pnand %p172, %p173
      %p175 = pneg %p174
      // Predicated region
      $region9: #{tpu_custom_call.1} parent=5 // pred_check
        _
      $region10: #{tpu_custom_call.1} parent=5 // pred_check_branch
        %177 = sbr.rel (%p174) target = $region12
      $region11: #{tpu_custom_call.1} parent=5 // pred_region
        %s178 = ssub.s32 %s14, 1
        // Predicated region
        $region13: #{tpu_custom_call.1} parent=11 // pred_check
          %p179 = pneg %p73
        $region14: #{tpu_custom_call.1} parent=11 // pred_check_branch
          %181 = sbr.rel (%p179) target = $region16
        $region15: #{tpu_custom_call.1} parent=11 // pred_region
          _
        $region16: #{tpu_custom_call.1} parent=11 // pred_fallthru
          _
        // Predicated region
        $region17: #{tpu_custom_call.1} parent=11 // pred_check
          %p182 = pneg %p94
        $region18: #{tpu_custom_call.1} parent=11 // pred_check_branch
          %184 = sbr.rel (%p182) target = $region20
        $region19: #{tpu_custom_call.1} parent=11 // pred_region
          _
        $region20: #{tpu_custom_call.1} parent=11 // pred_fallthru
          _
        // Predicated region
        $region21: #{tpu_custom_call.1} parent=11 // pred_check
          %p185 = pneg %p115
        $region22: #{tpu_custom_call.1} parent=11 // pred_check_branch
          %187 = sbr.rel (%p185) target = $region24
        $region23: #{tpu_custom_call.1} parent=11 // pred_region
          _
        $region24: #{tpu_custom_call.1} parent=11 // pred_fallthru
          _
        // Predicated region
        $region25: #{tpu_custom_call.1} parent=11 // pred_check
          %p188 = pneg %p136
        $region26: #{tpu_custom_call.1} parent=11 // pred_check_branch
          %190 = sbr.rel (%p188) target = $region28
        $region27: #{tpu_custom_call.1} parent=11 // pred_region
          _
        $region28: #{tpu_custom_call.1} parent=11 // pred_fallthru
          _
      $region12: #{tpu_custom_call.1} parent=5 // pred_fallthru
        _
      %p191 = scmp.lt.s32.totalorder %s14, 4
      // Predicated region
      $region29: #{tpu_custom_call.1} parent=5 // pred_check
        %p192 = pneg %p191
      $region30: #{tpu_custom_call.1} parent=5 // pred_check_branch
        %194 = sbr.rel (%p192) target = $region32
      $region31: #{tpu_custom_call.1} parent=5 // pred_region
        // Predicated region
        $region33: #{tpu_custom_call.1} parent=31 // pred_check
          %p195 = pneg %p46
        $region34: #{tpu_custom_call.1} parent=31 // pred_check_branch
          %197 = sbr.rel (%p195) target = $region36
        $region35: #{tpu_custom_call.1} parent=31 // pred_region
          %s198 = smul.u32 8, %s22
          %p199 = scmp.lt.s32.totalorder %s198, 15
          %s200 = scalar_select %p199, %s198, 15
          %s201 = smul.addr %s200, 4
          %s202 = scalar_lea.vmem %s0, %s201
          %s203 = smul.u32 8, %s22
        $region36: #{tpu_custom_call.1} parent=31 // pred_fallthru
          _
      $region32: #{tpu_custom_call.1} parent=5 // pred_fallthru
        _
      %p204 = scmp.le.s32.totalorder 1, %s14
      %p205 = scmp.lt.s32.totalorder %s14, 5
      %p206 = pnand %p204, %p205
      %p207 = pneg %p206
      // Predicated region
      $region37: #{tpu_custom_call.1} parent=5 // pred_check
        _
      $region38: #{tpu_custom_call.1} parent=5 // pred_check_branch
        %209 = sbr.rel (%p206) target = $region40
      $region39: #{tpu_custom_call.1} parent=5 // pred_region
        %s210 = ssub.s32 %s14, 1
        %s211 = smul.u32 8, %s24
        %p212 = scmp.lt.s32.totalorder %s211, 15
        %s213 = scalar_select %p212, %s211, 15
        %s214 = smul.addr %s213, 4
        %s215 = scalar_lea.vmem %s0, %s214
        %p216 = pneg %p52
        %p217 = pneg %p49
        %p218 = pneg %p73
        %p219 = pneg %p70
        %p220 = pneg %p94
        %p221 = pneg %p91
        %p222 = pneg %p115
        %p223 = pneg %p112
        %p224 = pneg %p136
        %p225 = pneg %p133
        %p226 = pneg %p164
        %p227 = pneg %p161
        %s228 = sand.u32 %s151, 1
        %s229 = scalar_lea.sflag [#allocation7], %s228
        %s230 = sand.u32 %s151, 1
        %s231 = smul.addr %s230, 64
        %s232 = scalar_lea.vmem [#allocation6], %s231
        %s233 = smul.u32 8, %s24
        %p234 = scmp.lt.s32.totalorder %s233, 15
        %s235 = scalar_select %p234, %s233, 15
        %s236 = smul.addr %s235, 4
        %s237 = scalar_lea.vmem %s0, %s236
        %s238 = smul.u32 8, %s24
        %s239 = smul.u32 %s24, %s23
        %s240 = smul.u32 8, %s239
        %v242 = vld [vmem:[%s237] sm:$0xf]
        %v243 = vld [vmem:[%s237 + $0x4] sm:$0xf]
        %v244 = vld [vmem:[%s237 + $0x8] sm:$0xf]
        %v245 = vld [vmem:[%s237 + $0xc] sm:$0xf]
        %v246 = vld [vmem:[%s237 + $0x10] sm:$0xf]
        %v247 = vld [vmem:[%s237 + $0x14] sm:$0xf]
        %v248 = vld [vmem:[%s237 + $0x18] sm:$0xf]
        %v249 = vld [vmem:[%s237 + $0x1c] sm:$0xf]
        %v250 = vld [vmem:[%s1] sm:$0xf]
        %v251 = vld [vmem:[%s1 + $0x4] sm:$0xf]
        %v252 = vld [vmem:[%s1 + $0x8] sm:$0xf]
        %v253 = vld [vmem:[%s1 + $0xc] sm:$0xf]
        %v254 = vld [vmem:[%s1 + $0x10] sm:$0x3]
        %v263 = vunpack.c.l.b16 %v242
        %v264 = vunpack.c.l.b16 %v243
        %v265 = vunpack.c.l.b16 %v244
        %v266 = vunpack.c.l.b16 %v245
        %v267 = vunpack.c.l.b16 %v246
        %v268 = vunpack.c.l.b16 %v247
        %v269 = vunpack.c.l.b16 %v248
        %v270 = vunpack.c.l.b16 %v249
        %v271 = vpack.c.b16 %v264, %v263
        %v272 = vpack.c.b16 %v266, %v265
        %v273 = vpack.c.b16 %v268, %v267
        %v274 = vpack.c.b16 %v270, %v269
        %v280 = vunpack.c.l.b16 %v250
        %v281 = vunpack.c.l.b16 %v251
        %v282 = vunpack.c.l.b16 %v252
        %v283 = vunpack.c.l.b16 %v253
        %v284 = vunpack.c.l.b16 %v254
        %v285 = vpack.c.b16 %v281, %v280
        %v286 = vpack.c.b16 %v283, %v282
        %v287 = vpack.c.b16 %v284, %v284
        %vm290 = vcmask 293888
        %v292 = vsel %vm290, %v271, 0
        %v295 = vsel %vm290, %v272, 0
        %v298 = vsel %vm290, %v273, 0
        %v301 = vsel %vm290, %v274, 0
        %vm303 = vcmask 1041408
        %v305 = vsel %vm303, %v287, 0
        %307 = vmatprep.subr.bf16.mxu0 0
        %308 = vmatpush1.bf16.msra.mxu0 %v285
        %309 = vmatprep.subr.bf16.mxu0 0
        %310 = vmatpush1.bf16.msra.mxu0 %v286
        %311 = vmatprep.subr.bf16.mxu0 0
        %312 = vmatpush1.bf16.msra.mxu0 %v305
        %313 = vmatprep.subr.bf16.mxu0 0
        %314 = vmatpush1.bf16.msra.mxu0 0
        %315 = vmatprep.subr.bf16.mxu0 0
        %316 = vmatpush1.bf16.msra.mxu0 0
        %317 = vmatprep.subr.bf16.mxu0 0
        %318 = vmatpush1.bf16.msra.mxu0 0
        %319 = vmatprep.subr.bf16.mxu0 0
        %320 = vmatpush1.bf16.msra.mxu0 0
        %321 = vmatprep.subr.bf16.mxu0 0
        %322 = vmatpush1.bf16.msra.mxu0 0
        %323 = vmatprep.subr.bf16.mxu0 0
        %324 = vmatpush1.bf16.msra.mxu0 0
        %325 = vmatprep.subr.bf16.mxu0 0
        %326 = vmatpush1.bf16.msra.mxu0 0
        %327 = vmatprep.subr.bf16.mxu0 0
        %328 = vmatpush1.bf16.msra.mxu0 0
        %329 = vmatprep.subr.bf16.mxu0 0
        %330 = vmatpush1.bf16.msra.mxu0 0
        %331 = vmatprep.subr.bf16.mxu0 0
        %332 = vmatpush1.bf16.msra.mxu0 0
        %333 = vmatprep.subr.bf16.mxu0 0
        %334 = vmatpush1.bf16.msra.mxu0 0
        %335 = vmatprep.subr.bf16.mxu0 0
        %336 = vmatpush1.bf16.msra.mxu0 0
        %337 = vmatprep.subr.bf16.mxu0 0
        %338 = vmatpush1.bf16.msra.mxu0 0
        %339 = vmatprep.mubr.bf16.mxu0 0
        %340 = vmatmul.mubr.bf16.gmra.mrb[0].mxu0 %v292
        %v341 = vpop.f32.mrb[0].mxu0
        %v342 = vadd.f32 0.0, %v341
        %v343 = vpop.f32.mrb[0].mxu0
        %v344 = vpop.f32.mrb[0].mxu0
        %v345 = vadd.f32 0.0, %v344
        %v346 = vpop.f32.mrb[0].mxu0
        %347 = vmatprep.mubr.bf16.mxu0 0
        %348 = vmatmul.mubr.bf16.gmra.mrb[0].mxu0 %v295
        %v349 = vpop.f32.mrb[0].mxu0
        %v350 = vadd.f32 0.0, %v349
        %v351 = vpop.f32.mrb[0].mxu0
        %v352 = vpop.f32.mrb[0].mxu0
        %v353 = vadd.f32 0.0, %v352
        %v354 = vpop.f32.mrb[0].mxu0
        %355 = vmatprep.mubr.bf16.mxu0 0
        %356 = vmatmul.mubr.bf16.gmra.mrb[0].mxu0 %v298
        %v357 = vpop.f32.mrb[0].mxu0
        %v358 = vadd.f32 0.0, %v357
        %v359 = vpop.f32.mrb[0].mxu0
        %v360 = vpop.f32.mrb[0].mxu0
        %v361 = vadd.f32 0.0, %v360
        %v362 = vpop.f32.mrb[0].mxu0
        %363 = vmatprep.mubr.bf16.mxu0 0
        %364 = vmatmul.mubr.bf16.gmra.mrb[0].mxu0 %v301
        %v365 = vpop.f32.mrb[0].mxu0
        %v366 = vadd.f32 0.0, %v365
        %v367 = vpop.f32.mrb[0].mxu0
        %v368 = vpop.f32.mrb[0].mxu0
        %v369 = vadd.f32 0.0, %v368
        %v370 = vpop.f32.mrb[0].mxu0
        %371 = vdwg.mxu0
        %p372 = scmp.eq.s32.totalorder %s23, 0
        // Predicated region
        $region41: #{tpu_custom_call.1} parent=39 // pred_check
          %p373 = pneg %p372
        $region42: #{tpu_custom_call.1} parent=39 // pred_check_branch
          %375 = sbr.rel (%p373) target = $region44
        $region43: #{tpu_custom_call.1} parent=39 // pred_region
          %p376 = scmp.eq.s32.totalorder %s24, 0
          // Predicated region
          $region45: #{tpu_custom_call.1} parent=43 // pred_check
            %p377 = pneg %p376
          $region46: #{tpu_custom_call.1} parent=43 // pred_check_branch
            %379 = sbr.rel (%p377) target = $region48
          $region47: #{tpu_custom_call.1} parent=43 // pred_region
            %380 = vst [vmem:[#allocation2] sm:$0x1] 0.0
            %381 = vst [vmem:[#allocation3] sm:$0x1] 0.0
          $region48: #{tpu_custom_call.1} parent=43 // pred_fallthru
            _
          %v382 = vld [vmem:[#allocation2] sm:$0x1]
          %v383 = vadd.f32 %v342, %v345
          %v384 = vadd.f32 %v383, %v350
          %v385 = vadd.f32 %v384, %v353
          %v386 = vadd.f32 %v385, %v358
          %v387 = vadd.f32 %v386, %v361
          %v388 = vadd.f32 %v387, %v366
          %v389 = vadd.f32 %v388, %v369
          %v390 = vrot.slane %v389, 4
          %v391 = vadd.f32 %v389, %v390
          %v392 = vrot.slane %v391, 2
          %v393 = vadd.f32 %v391, %v392
          %v394 = vrot.slane %v393, 1
          %v395 = vadd.f32 %v393, %v394
          %v396 = vadd.f32 %v382, %v395
          %397 = vst [vmem:[#allocation2] sm:$0x1] %v396
          %v398 = vld [vmem:[#allocation3] sm:$0x1]
          %v399 = vmul.f32 %v342, %v342
          %v400 = vmul.f32 %v345, %v345
          %v401 = vmul.f32 %v350, %v350
          %v402 = vmul.f32 %v353, %v353
          %v403 = vmul.f32 %v358, %v358
          %v404 = vmul.f32 %v361, %v361
          %v405 = vmul.f32 %v366, %v366
          %v406 = vmul.f32 %v369, %v369
          %v407 = vadd.f32 %v399, %v400
          %v408 = vadd.f32 %v407, %v401
          %v409 = vadd.f32 %v408, %v402
          %v410 = vadd.f32 %v409, %v403
          %v411 = vadd.f32 %v410, %v404
          %v412 = vadd.f32 %v411, %v405
          %v413 = vadd.f32 %v412, %v406
          %v414 = vrot.slane %v413, 4
          %v415 = vadd.f32 %v413, %v414
          %v416 = vrot.slane %v415, 2
          %v417 = vadd.f32 %v415, %v416
          %v418 = vrot.slane %v417, 1
          %v419 = vadd.f32 %v417, %v418
          %v420 = vadd.f32 %v398, %v419
          %421 = vst [vmem:[#allocation3] sm:$0x1] %v420
          %p422 = scmp.eq.s32.totalorder %s24, 1
          // Predicated region
          $region49: #{tpu_custom_call.1} parent=43 // pred_check
            %p423 = pneg %p422
          $region50: #{tpu_custom_call.1} parent=43 // pred_check_branch
            %425 = sbr.rel (%p423) target = $region52
          $region51: #{tpu_custom_call.1} parent=43 // pred_region
            %v426 = vld [vmem:[#allocation2] sm:$0x1]
            %v427 = vmul.f32 %v426, 0.010204081
            %v428 = vld [vmem:[#allocation3] sm:$0x1]
            %v429 = vmul.f32 %v428, 0.010204081
            %v430 = vmul.f32 %v427, %v427
            %v431 = vsub.f32 %v429, %v430
            %v432 = vmax.f32 %v431, 0.0
            %v433 = vld [vmem:[%s2] sm:$0x1]
            %v434 = vadd.f32 %v432, 1e-05
            %v435 = vrsqrt.pop %v434
            %v436 = vmul.f32 %v433, %v435
            %437 = vst [vmem:[#allocation4] sm:$0x1] %v436
            %v438 = vld [vmem:[%s3] sm:$0x1]
            %v439 = vmul.f32 %v427, %v436
            %v440 = vsub.f32 %v438, %v439
            %441 = vst [vmem:[#allocation5] sm:$0x1] %v440
          $region52: #{tpu_custom_call.1} parent=43 // pred_fallthru
            _
        $region44: #{tpu_custom_call.1} parent=39 // pred_fallthru
          _
        %p442 = scmp.eq.s32.totalorder %s23, 1
        // Predicated region
        $region53: #{tpu_custom_call.1} parent=39 // pred_check
          %p443 = pneg %p442
        $region54: #{tpu_custom_call.1} parent=39 // pred_check_branch
          %445 = sbr.rel (%p443) target = $region56
        $region55: #{tpu_custom_call.1} parent=39 // pred_region
          %v446 = vld [vmem:[#allocation4] sm:$0x1]
          %v448 = vlaneseq
          %v449 = vshrl.u32 %v448, 7
          %v450 = vsub.s32 0, %v449
          %v451 = vrot.slane %v446, %v450
          %v453 = vmul.f32 %v342, %v451
          %v454 = vmul.f32 %v345, %v451
          %v455 = vmul.f32 %v350, %v451
          %v456 = vmul.f32 %v353, %v451
          %v457 = vmul.f32 %v358, %v451
          %v458 = vmul.f32 %v361, %v451
          %v459 = vmul.f32 %v366, %v451
          %v460 = vmul.f32 %v369, %v451
          %v461 = vld [vmem:[#allocation5] sm:$0x1]
          %v463 = vlaneseq
          %v464 = vshrl.u32 %v463, 7
          %v465 = vsub.s32 0, %v464
          %v466 = vrot.slane %v461, %v465
          %v468 = vadd.f32 %v453, %v466
          %v469 = vadd.f32 %v454, %v466
          %v470 = vadd.f32 %v455, %v466
          %v471 = vadd.f32 %v456, %v466
          %v472 = vadd.f32 %v457, %v466
          %v473 = vadd.f32 %v458, %v466
          %v474 = vadd.f32 %v459, %v466
          %v475 = vadd.f32 %v460, %v466
          %vm476 = vcmp.ge.f32.partialorder %v468, 0.0
          %vm477 = vcmp.ge.f32.partialorder %v469, 0.0
          %vm478 = vcmp.ge.f32.partialorder %v470, 0.0
          %vm479 = vcmp.ge.f32.partialorder %v471, 0.0
          %vm480 = vcmp.ge.f32.partialorder %v472, 0.0
          %vm481 = vcmp.ge.f32.partialorder %v473, 0.0
          %vm482 = vcmp.ge.f32.partialorder %v474, 0.0
          %vm483 = vcmp.ge.f32.partialorder %v475, 0.0
          %v484 = vld [vmem:[%s4] sm:$0x1]
          %v486 = vlaneseq
          %v487 = vshrl.u32 %v486, 7
          %v488 = vsub.s32 0, %v487
          %v489 = vrot.slane %v484, %v488
          %v491 = vmul.f32 %v489, %v468
          %v492 = vmul.f32 %v489, %v469
          %v493 = vmul.f32 %v489, %v470
          %v494 = vmul.f32 %v489, %v471
          %v495 = vmul.f32 %v489, %v472
          %v496 = vmul.f32 %v489, %v473
          %v497 = vmul.f32 %v489, %v474
          %v498 = vmul.f32 %v489, %v475
          %v499 = vsel %vm476, %v468, %v491
          %v500 = vsel %vm477, %v469, %v492
          %v501 = vsel %vm478, %v470, %v493
          %v502 = vsel %vm479, %v471, %v494
          %v503 = vsel %vm480, %v472, %v495
          %v504 = vsel %vm481, %v473, %v496
          %v505 = vsel %vm482, %v474, %v497
          %v506 = vsel %vm483, %v475, %v498
          %507 = vst [vmem:[%s232] sm:$0xff] %v499
          %508 = vst [vmem:[%s232 + $0x8] sm:$0xff] %v500
          %509 = vst [vmem:[%s232 + $0x10] sm:$0xff] %v501
          %510 = vst [vmem:[%s232 + $0x18] sm:$0xff] %v502
          %511 = vst [vmem:[%s232 + $0x20] sm:$0xff] %v503
          %512 = vst [vmem:[%s232 + $0x28] sm:$0xff] %v504
          %513 = vst [vmem:[%s232 + $0x30] sm:$0xff] %v505
          %514 = vst [vmem:[%s232 + $0x38] sm:$0xff] %v506
        $region56: #{tpu_custom_call.1} parent=39 // pred_fallthru
          _
        %s515 = sand.u32 %s151, 1
        %s516 = scalar_lea.sflag [#allocation7], %s515
        %s517 = sand.u32 %s151, 1
        %s518 = smul.addr %s517, 64
        %s519 = scalar_lea.vmem [#allocation6], %s518
        // Predicated region
        $region57: #{tpu_custom_call.1} parent=39 // pred_check
          %p520 = pneg %p161
        $region58: #{tpu_custom_call.1} parent=39 // pred_check_branch
          %522 = sbr.rel (%p520) target = $region60
        $region59: #{tpu_custom_call.1} parent=39 // pred_region
          %s523 = smul.u32 %s24, %s23
          %s524 = smul.u32 8, %s523
          %s526 = ssub.s32 1024, 1024
          %527 = vsyncadd %s516, %s526
          %s528 = smul.addr %s524, 128
          %s529 = scalar_lea.hbm %s5, %s528
          %s530 = sshll.u32 %s519, 4
          %s531 = int_to_ptr.vmem [resolvable:$true] %s530
          %536 = dma.vmem_to_hbm [thread:$0]  %s531, 1024, %s529, %s516, 128, 128, 8
        $region60: #{tpu_custom_call.1} parent=39 // pred_fallthru
          _
      $region40: #{tpu_custom_call.1} parent=5 // pred_fallthru
        _
      %p537 = scmp.le.s32.totalorder 2, %s14
      // Predicated region
      $region61: #{tpu_custom_call.1} parent=5 // pred_check
        %p538 = pneg %p537
      $region62: #{tpu_custom_call.1} parent=5 // pred_check_branch
        %540 = sbr.rel (%p538) target = $region64
      $region63: #{tpu_custom_call.1} parent=5 // pred_region
        %s541 = ssub.s32 %s14, 2
        // Predicated region
        $region65: #{tpu_custom_call.1} parent=63 // pred_check
          %p542 = pneg %p167
        $region66: #{tpu_custom_call.1} parent=63 // pred_check_branch
          %544 = sbr.rel (%p542) target = $region68
        $region67: #{tpu_custom_call.1} parent=63 // pred_region
          %s545 = sand.u32 %s152, 1
          %s546 = scalar_lea.sflag [#allocation7], %s545
          %s547 = sand.u32 %s152, 1
          %s548 = smul.addr %s547, 64
          %s549 = scalar_lea.vmem [#allocation6], %s548
          %550 = dma.done %s546, 1024
        $region68: #{tpu_custom_call.1} parent=63 // pred_fallthru
          _
      $region64: #{tpu_custom_call.1} parent=5 // pred_fallthru
        _
    $region6: #{tpu_custom_call.1} parent=1 // loop_footer
      %s18 = sadd.s32 1, %s14
    $region7: #{tpu_custom_call.1} parent=1 // loop_footer_branch
      %13 = sbr.rel target = $region3
    $region8: #{tpu_custom_call.1} parent=1 // loop_exit
      _
    %551 = vsyncpa [#allocation7], 1
    %s552 = scalar_lea.sflag [#allocation7], 1
    %553 = vsyncpa %s552, 1

</llo_original>
